<compile_context>
chip_gen: v7x
topology: tpu7x:2x2x1
jax: 0.10.0
libtpu: 0.0.40
codegen_flags: <defaults>
</compile_context>

<pallas_src>
import functools

import numpy as np
import jax
import jax.numpy as jnp
from jax.experimental import pallas as pl
from jax.experimental.pallas import tpu as pltpu


def _focal_loss_kernel(logit_ref, target_ref, out_ref, *,
                       hw, num_class, gamma, smooth, tile_r, acc_r,
                       rtiles_per_chunk, alpha_vals, alpha_is_ones,
                       reduce_mean, need_mask):
    if reduce_mean:
        t = pl.program_id(2)
        rt = pl.program_id(1) * rtiles_per_chunk + t      # unclamped: drives the mask

        @pl.when(t == 0)
        def _():
            out_ref[...] = jnp.zeros_like(out_ref)
    else:
        rt = pl.program_id(1)

    tgt = target_ref[...]
    if tgt.dtype != jnp.int32:
        tgt = tgt.astype(jnp.int32)                       # narrow target DMA, cheap upcast
    shp = tgt.shape                                        # (tile_r, 128) dense vregs

    # torch.clamp(one_hot, lo, hi) on a {0,1} one-hot == select(one_hot, hi, lo)
    lo = (smooth / (num_class - 1)) if num_class > 1 else 0.0
    hi = 1.0 - smooth

    pt = jnp.full(shp, smooth, jnp.float32)
    alpha_px = None
    if not alpha_is_ones:
        alpha_px = jnp.full(shp, alpha_vals[0], jnp.float32)

    # Unrolled class loop: leading-dim slices of the logit block -> pure VPU FMAs,
    # no (C, tile) one-hot / iota temporaries, alpha gather fused into the same loop.
    for c in range(num_class):
        sel = tgt == c
        w_c = jnp.where(sel, hi, lo)
        pt = pt + w_c * logit_ref[c].astype(jnp.float32)
        if (not alpha_is_ones) and c > 0:
            alpha_px = jnp.where(sel, alpha_vals[c], alpha_px)

    if need_mask:
        row = jax.lax.broadcasted_iota(jnp.int32, shp, 0)
        lane = jax.lax.broadcasted_iota(jnp.int32, shp, 1)
        pix = (rt * tile_r + row) * 128 + lane            # global pixel index
        valid = pix < hw
        pt = jnp.where(valid, pt, 1.0)                    # before log/pow: no NaN leakage

    logpt = jnp.log(pt)
    omp = 1.0 - pt

    g = float(gamma)
    if g == 0.0:
        focal = jnp.ones_like(omp)
    elif g == int(g) and g > 0.0:
        focal = omp                                        # gamma=2 -> exactly one multiply
        for _ in range(int(g) - 1):
            focal = focal * omp
    else:
        # TODO(synk): torch.pow(negative, non-integer) would give NaN; we clamp to 0 instead.
        focal = jnp.power(jnp.maximum(omp, 0.0), g)

    loss = -(focal * logpt)
    if not alpha_is_ones:
        loss = loss * alpha_px
    if need_mask:
        loss = jnp.where(valid, loss, 0.0)

    if reduce_mean:
        if acc_r != tile_r:
            # fold rows into a small (8, 128) accumulator with leading-axis VPU adds
            loss = loss.reshape(tile_r // acc_r, acc_r, 128).sum(axis=0)
        out_ref[...] = out_ref[...] + loss
    else:
        out_ref[...] = loss


def _vmem_capacity_bytes():
    try:
        return int(getattr(pltpu.get_tpu_info(), "vmem_capacity_bytes", 64 << 20))
    except Exception:
        return 64 << 20                                    # conservative (v7x per-TC)


def _choose_tile_r(r_total, num_class, logit_bytes, target_bytes, vmem_capacity):
    """Rows of 128 pixels per grid step.  Budget ~1/8 of physical VMEM
    (16 MiB on v5e/v6e, 8 MiB on v7x) counting double-buffered logit/target/output
    tiles plus ~8 live f32 (tile_r,128) temporaries."""
    budget = max(2 << 20, vmem_capacity // 8)
    per_row = 128 * (2 * num_class * logit_bytes + 2 * target_bytes + 2 * 4 + 8 * 4)
    tile_r = int(budget // per_row)
    tile_r = max(32, (tile_r // 32) * 32)                  # 32: safe for f32/bf16/int8 tiling
    tile_r = min(tile_r, 4096)
    if r_total <= tile_r:
        return r_total                                     # full row dim: always legal
    return tile_r


def focal_loss(logit, target, alpha=None, gamma=2.0, balance_index=0,
               smooth=1e-5, size_average=True, tile_r=None):
    """Pallas implementation of FocalLoss.forward with apply_nonlin=None."""
    if smooth is not None and (smooth < 0 or smooth > 1.0):
        raise ValueError('smooth value should be in [0,1]')
    smooth_val = float(smooth) if smooth else 0.0

    num_class = logit.shape[1]

    # Natural class-major layout (N, C, HW): free view, no wrapper transpose.
    if logit.ndim > 2:
        n = logit.shape[0]
        logit3 = logit.reshape(n, num_class, -1)
    else:
        n = 1
        logit3 = jnp.transpose(logit, (1, 0))[None]        # rare 2-D path: one transpose
    hw = logit3.shape[2]

    tgt = target
    if tgt.ndim > 1 and tgt.ndim == logit.ndim and tgt.shape[1] == 1:
        tgt = jnp.squeeze(tgt, axis=1)
    tgt2 = tgt.reshape(n, hw)
    if not jnp.issubdtype(tgt2.dtype, jnp.integer):
        tgt2 = tgt2.astype(jnp.int32)                      # keep integer dtypes narrow

    # Dense pixel layout: (N, C, R, 128).  Free view when HW % 128 == 0.
    r_total = pl.cdiv(hw, 128)
    hw_pad = r_total * 128
    if hw_pad != hw:
        # TODO(synk): non-128-multiple spatial size needs one pad pass (extra HBM traffic).
        logit3 = jnp.pad(logit3, ((0, 0), (0, 0), (0, hw_pad - hw)))
        tgt2 = jnp.pad(tgt2, ((0, 0), (0, hw_pad - hw)))
    logit4 = logit3.reshape(n, num_class, r_total, 128)
    tgt3 = tgt2.reshape(n, r_total, 128)

    # alpha baked as compile-time constants (module semantics: list / np / float / None).
    alpha_is_ones = alpha is None
    if alpha is None:
        alpha_vals = (1.0,) * num_class
    elif isinstance(alpha, (list, tuple, np.ndarray, jnp.ndarray)):
        a = np.asarray(alpha, dtype=np.float64).reshape(-1)
        assert a.shape[0] == num_class
        a = a / a.sum()
        alpha_vals = tuple(float(v) for v in a)
    elif isinstance(alpha, float):
        a = np.full((num_class,), 1.0 - alpha, np.float64)
        a[balance_index] = alpha
        alpha_vals = tuple(float(v) for v in a)
    else:
        raise TypeError('Not support alpha type')

    vmem_cap = _vmem_capacity_bytes()
    logit_bytes = jnp.dtype(logit4.dtype).itemsize
    target_bytes = jnp.dtype(tgt3.dtype).itemsize
    if tile_r is None:
        tile_r = _choose_tile_r(r_total, num_class, logit_bytes, target_bytes, vmem_cap)
    else:
        tile_r = min(int(tile_r), r_total)
    num_rtiles = pl.cdiv(r_total, tile_r)
    vmem_limit = int(min(max(vmem_cap // 2, 32 << 20), 64 << 20))

    reduce_mean = bool(size_average)
    if reduce_mean:
        # Parallel HW-chunk axis so both v7x TensorCores work even when n == 1.
        num_chunks = 2 if (n == 1 and num_rtiles >= 2) else 1
        rpc = pl.cdiv(num_rtiles, num_chunks)
        acc_r = 8 if tile_r % 8 == 0 else tile_r
        need_mask = ((hw_pad != hw) or (num_rtiles * tile_r != r_total)
                     or (num_chunks * rpc != num_rtiles))
        last_rt = num_rtiles - 1

        def rt_idx(c, t):
            return jnp.minimum(c * rpc + t, last_rt)       # clamp duplicated chunk steps

        in_specs = [
            pl.BlockSpec((None, num_class, tile_r, 128),
                         lambda i, c, t: (i, 0, rt_idx(c, t), 0)),
            pl.BlockSpec((None, tile_r, 128),
                         lambda i, c, t: (i, rt_idx(c, t), 0)),
        ]
        out_shape = jax.ShapeDtypeStruct((n, num_chunks, acc_r, 128), jnp.float32)
        out_spec = pl.BlockSpec((None, None, acc_r, 128), lambda i, c, t: (i, c, 0, 0))
        grid = (n, num_chunks, rpc)
        dims = ("parallel", "parallel", "arbitrary")
    else:
        rpc = num_rtiles
        acc_r = tile_r
        need_mask = (hw_pad != hw) or (num_rtiles * tile_r != r_total)
        in_specs = [
            pl.BlockSpec((None, num_class, tile_r, 128), lambda i, t: (i, 0, t, 0)),
            pl.BlockSpec((None, tile_r, 128), lambda i, t: (i, t, 0)),
        ]
        out_shape = jax.ShapeDtypeStruct((n, r_total, 128), jnp.float32)
        out_spec = pl.BlockSpec((None, tile_r, 128), lambda i, t: (i, t, 0))
        grid = (n, num_rtiles)
        dims = ("parallel", "parallel")

    kernel = functools.partial(
        _focal_loss_kernel,
        hw=hw, num_class=num_class, gamma=float(gamma), smooth=smooth_val,
        tile_r=tile_r, acc_r=acc_r, rtiles_per_chunk=rpc,
        alpha_vals=alpha_vals, alpha_is_ones=alpha_is_ones,
        reduce_mean=reduce_mean, need_mask=need_mask)

    out = pl.pallas_call(
        kernel,
        out_shape=out_shape,
        grid_spec=pltpu.PrefetchScalarGridSpec(
            num_scalar_prefetch=0,
            grid=grid,
            in_specs=in_specs,
            out_specs=out_spec),
        compiler_params=pltpu.CompilerParams(
            dimension_semantics=dims,
            vmem_limit_bytes=vmem_limit),
    )(logit4, tgt3)

    if reduce_mean:
        return jnp.sum(out) / float(n * hw)
    # per-element loss in PyTorch order (m = i*HW + p); free reshape when HW % 128 == 0
    if hw_pad == hw:
        return out.reshape(-1)
    return out.reshape(n, hw_pad)[:, :hw].reshape(-1)


def _focal_loss_ref(logit, target, alpha=None, gamma=2.0, balance_index=0,
                    smooth=1e-5, size_average=True):
    """Pure-JAX reference mirroring the PyTorch forward (for verification)."""
    num_class = logit.shape[1]
    if logit.ndim > 2:
        n, c = logit.shape[0], logit.shape[1]
        logit = jnp.transpose(logit.reshape(n, c, -1), (0, 2, 1)).reshape(-1, c)
    tgt = target.reshape(-1).astype(jnp.int32)
    if alpha is None:
        alpha_vec = jnp.ones((num_class,), jnp.float32)
    elif isinstance(alpha, (list, tuple, np.ndarray, jnp.ndarray)):
        a = jnp.asarray(alpha, jnp.float32)
        alpha_vec = a / a.sum()
    elif isinstance(alpha, float):
        alpha_vec = jnp.full((num_class,), 1.0 - alpha, jnp.float32)
        alpha_vec = alpha_vec.at[balance_index].set(alpha)
    else:
        raise TypeError('Not support alpha type')
    one_hot = jax.nn.one_hot(tgt, num_class, dtype=jnp.float32)
    smooth = 0.0 if smooth is None else smooth
    if smooth:
        one_hot = jnp.clip(one_hot, smooth / (num_class - 1), 1.0 - smooth)
    pt = jnp.sum(one_hot * logit.astype(jnp.float32), axis=1) + smooth
    logpt = jnp.log(pt)
    a = alpha_vec[tgt]
    loss = -a * jnp.power(1.0 - pt, gamma) * logpt
    return loss.mean() if size_average else loss


if __name__ == "__main__":
    key = jax.random.PRNGKey(0)
    k1, k2, k3, k4, k5, k6 = jax.random.split(key, 6)

    # ---- Test 1: default mean reduction, alpha=None, f32 probabilities ----
    N, C, H, W = 2, 4, 16, 16
    raw = jax.random.normal(k1, (N, C, H, W), dtype=jnp.float32)
    logit = jax.nn.softmax(raw, axis=1)            # apply_nonlin=None -> feed probabilities
    target = jax.random.randint(k2, (N, 1, H, W), 0, C, dtype=jnp.int32)

    loss = jax.block_until_ready(
        focal_loss(logit, target, alpha=None, gamma=2.0, balance_index=0,
                   smooth=1e-5, size_average=True))
    ref = _focal_loss_ref(logit, target, alpha=None, gamma=2.0,
                          balance_index=0, smooth=1e-5, size_average=True)
    assert jnp.allclose(loss, ref, rtol=1e-4, atol=1e-5), (loss, ref)

    # ---- Test 2: per-element path with class-weight alpha list ----
    alpha_list = [0.1, 0.2, 0.3, 0.4]
    loss_vec = jax.block_until_ready(
        focal_loss(logit, target, alpha=alpha_list, gamma=2.0, balance_index=0,
                   smooth=1e-5, size_average=False))
    ref_vec = _focal_loss_ref(logit, target, alpha=alpha_list, gamma=2.0,
                              balance_index=0, smooth=1e-5, size_average=False)
    assert loss_vec.shape == ref_vec.shape
    assert jnp.allclose(loss_vec, ref_vec, rtol=1e-4, atol=1e-5), (loss_vec, ref_vec)

    # ---- Test 3: batch=1 dual-chunk (v7x-style) mean path, float alpha, small forced tiles ----
    N3, C3, H3, W3 = 1, 4, 64, 64
    raw3 = jax.random.normal(k3, (N3, C3, H3, W3), dtype=jnp.float32)
    logit3 = jax.nn.softmax(raw3, axis=1)
    target3 = jax.random.randint(k4, (N3, 1, H3, W3), 0, C3, dtype=jnp.int32)
    loss3 = jax.block_until_ready(
        focal_loss(logit3, target3, alpha=0.25, gamma=2.0, balance_index=0,
                   smooth=1e-5, size_average=True, tile_r=8))
    ref3 = _focal_loss_ref(logit3, target3, alpha=0.25, gamma=2.0,
                           balance_index=0, smooth=1e-5, size_average=True)
    assert jnp.allclose(loss3, ref3, rtol=1e-4, atol=1e-5), (loss3, ref3)

    # ---- Test 4: non-128-multiple spatial size + bf16 logits (padded / masked path) ----
    N4, C4, H4, W4 = 2, 4, 12, 12
    raw4 = jax.random.normal(k5, (N4, C4, H4, W4), dtype=jnp.float32)
    logit4 = jax.nn.softmax(raw4, axis=1).astype(jnp.bfloat16)
    target4 = jax.random.randint(k6, (N4, H4, W4), 0, C4, dtype=jnp.int32)
    loss4 = jax.block_until_ready(
        focal_loss(logit4, target4, alpha=None, gamma=2.0, balance_index=0,
                   smooth=1e-5, size_average=True))
    ref4 = _focal_loss_ref(logit4, target4, alpha=None, gamma=2.0,
                           balance_index=0, smooth=1e-5, size_average=True)
    assert jnp.allclose(loss4, ref4, rtol=5e-3, atol=1e-5), (loss4, ref4)

    print("KERNEL_OK")
</pallas_src>

<mosaic_0001>
module attributes {stable_mosaic.version = 11 : i64} {
  func.func @_focal_loss_kernel(%arg0: i32, %arg1: i32, %arg2: i32, %arg3: memref<1x4x2x128xf32, #tpu.memory_space<vmem>>, %arg4: memref<1x2x128xi32, #tpu.memory_space<vmem>>, %arg5: memref<1x1x2x128xf32, #tpu.memory_space<vmem>>) attributes {dimension_semantics = [#tpu.dimension_semantics<parallel>, #tpu.dimension_semantics<parallel>, #tpu.dimension_semantics<arbitrary>], iteration_bounds = array<i64: 2, 1, 1>, scalar_prefetch = 0 : i64, scratch_operands = 0 : i64, tpu.core_type = #tpu.core_type<tc>, window_params = [{transform_indices = @transform_0, window_bounds = array<i64: 1, 4, 2, 128>}, {transform_indices = @transform_1, window_bounds = array<i64: 1, 2, 128>}, {transform_indices = @transform_2, window_bounds = array<i64: 1, 1, 2, 128>}]} {
    %c0_i32 = arith.constant 0 : i32
    %0 = arith.cmpi eq, %arg2, %c0_i32 : i32
    %1 = arith.extui %0 : i1 to i32
    %c0_i32_0 = arith.constant 0 : i32
    %2 = arith.cmpi ne, %1, %c0_i32_0 : i32
    scf.if %2 {
      %cst_35 = arith.constant 0.000000e+00 : f32
      %55 = vector.broadcast %cst_35 : f32 to vector<2x128xf32>
      %c0_36 = arith.constant 0 : index
      %c0_37 = arith.constant 0 : index
      %c0_38 = arith.constant 0 : index
      %c0_39 = arith.constant 0 : index
      %56 = vector.load %arg5[%c0_36, %c0_37, %c0_38, %c0_39] : memref<1x1x2x128xf32, #tpu.memory_space<vmem>>, vector<1x1x2x128xf32>
      %57 = vector.shape_cast %56 : vector<1x1x2x128xf32> to vector<2x128xf32>
      %58 = vector.shape_cast %55 : vector<2x128xf32> to vector<1x1x2x128xf32>
      tpu.vector_store %arg5[%c0_36, %c0_37, %c0_38, %c0_39], %58 {strides = array<i32>} : memref<1x1x2x128xf32, #tpu.memory_space<vmem>>, vector<1x1x2x128xf32>,
    } else {
    }
    %c0 = arith.constant 0 : index
    %c0_1 = arith.constant 0 : index
    %c0_2 = arith.constant 0 : index
    %3 = vector.load %arg4[%c0, %c0_1, %c0_2] : memref<1x2x128xi32, #tpu.memory_space<vmem>>, vector<1x2x128xi32>
    %4 = vector.shape_cast %3 : vector<1x2x128xi32> to vector<2x128xi32>
    %cst = arith.constant 9.99999974E-6 : f32
    %5 = vector.broadcast %cst : f32 to vector<2x128xf32>
    %c0_i32_3 = arith.constant 0 : i32
    %6 = vector.broadcast %c0_i32_3 : i32 to vector<2x128xi32>
    %7 = arith.cmpi eq, %4, %6 : vector<2x128xi32>
    %cst_4 = arith.constant 0.999989986 : f32
    %cst_5 = arith.constant 3.33333332E-6 : f32
    %8 = vector.broadcast %cst_4 : f32 to vector<2x128xf32>
    %9 = vector.broadcast %cst_5 : f32 to vector<2x128xf32>
    %10 = arith.select %7, %8, %9 : vector<2x128xi1>, vector<2x128xf32>
    %c0_6 = arith.constant 0 : index
    %c0_7 = arith.constant 0 : index
    %c0_8 = arith.constant 0 : index
    %c0_9 = arith.constant 0 : index
    %11 = vector.load %arg3[%c0_6, %c0_7, %c0_8, %c0_9] : memref<1x4x2x128xf32, #tpu.memory_space<vmem>>, vector<1x1x2x128xf32>
    %12 = vector.shape_cast %11 : vector<1x1x2x128xf32> to vector<2x128xf32>
    %13 = arith.mulf %10, %12 : vector<2x128xf32>
    %14 = arith.addf %5, %13 : vector<2x128xf32>
    %c1_i32 = arith.constant 1 : i32
    %15 = vector.broadcast %c1_i32 : i32 to vector<2x128xi32>
    %16 = arith.cmpi eq, %4, %15 : vector<2x128xi32>
    %cst_10 = arith.constant 0.999989986 : f32
    %cst_11 = arith.constant 3.33333332E-6 : f32
    %17 = vector.broadcast %cst_10 : f32 to vector<2x128xf32>
    %18 = vector.broadcast %cst_11 : f32 to vector<2x128xf32>
    %19 = arith.select %16, %17, %18 : vector<2x128xi1>, vector<2x128xf32>
    %c0_12 = arith.constant 0 : index
    %c1 = arith.constant 1 : index
    %c0_13 = arith.constant 0 : index
    %c0_14 = arith.constant 0 : index
    %20 = vector.load %arg3[%c0_12, %c1, %c0_13, %c0_14] : memref<1x4x2x128xf32, #tpu.memory_space<vmem>>, vector<1x1x2x128xf32>
    %21 = vector.shape_cast %20 : vector<1x1x2x128xf32> to vector<2x128xf32>
    %22 = arith.mulf %19, %21 : vector<2x128xf32>
    %23 = arith.addf %14, %22 : vector<2x128xf32>
    %c2_i32 = arith.constant 2 : i32
    %24 = vector.broadcast %c2_i32 : i32 to vector<2x128xi32>
    %25 = arith.cmpi eq, %4, %24 : vector<2x128xi32>
    %cst_15 = arith.constant 0.999989986 : f32
    %cst_16 = arith.constant 3.33333332E-6 : f32
    %26 = vector.broadcast %cst_15 : f32 to vector<2x128xf32>
    %27 = vector.broadcast %cst_16 : f32 to vector<2x128xf32>
    %28 = arith.select %25, %26, %27 : vector<2x128xi1>, vector<2x128xf32>
    %c0_17 = arith.constant 0 : index
    %c2 = arith.constant 2 : index
    %c0_18 = arith.constant 0 : index
    %c0_19 = arith.constant 0 : index
    %29 = vector.load %arg3[%c0_17, %c2, %c0_18, %c0_19] : memref<1x4x2x128xf32, #tpu.memory_space<vmem>>, vector<1x1x2x128xf32>
    %30 = vector.shape_cast %29 : vector<1x1x2x128xf32> to vector<2x128xf32>
    %31 = arith.mulf %28, %30 : vector<2x128xf32>
    %32 = arith.addf %23, %31 : vector<2x128xf32>
    %c3_i32 = arith.constant 3 : i32
    %33 = vector.broadcast %c3_i32 : i32 to vector<2x128xi32>
    %34 = arith.cmpi eq, %4, %33 : vector<2x128xi32>
    %cst_20 = arith.constant 0.999989986 : f32
    %cst_21 = arith.constant 3.33333332E-6 : f32
    %35 = vector.broadcast %cst_20 : f32 to vector<2x128xf32>
    %36 = vector.broadcast %cst_21 : f32 to vector<2x128xf32>
    %37 = arith.select %34, %35, %36 : vector<2x128xi1>, vector<2x128xf32>
    %c0_22 = arith.constant 0 : index
    %c3 = arith.constant 3 : index
    %c0_23 = arith.constant 0 : index
    %c0_24 = arith.constant 0 : index
    %38 = vector.load %arg3[%c0_22, %c3, %c0_23, %c0_24] : memref<1x4x2x128xf32, #tpu.memory_space<vmem>>, vector<1x1x2x128xf32>
    %39 = vector.shape_cast %38 : vector<1x1x2x128xf32> to vector<2x128xf32>
    %40 = arith.mulf %37, %39 : vector<2x128xf32>
    %41 = arith.addf %32, %40 : vector<2x128xf32>
    %42 = math.log %41 : vector<2x128xf32>
    %cst_25 = arith.constant 1.000000e+00 : f32
    %43 = vector.broadcast %cst_25 : f32 to vector<2x128xf32>
    %44 = arith.subf %43, %41 : vector<2x128xf32>
    %45 = arith.mulf %44, %44 : vector<2x128xf32>
    %46 = arith.mulf %45, %42 : vector<2x128xf32>
    %cst_26 = arith.constant 0.000000e+00 : f32
    %47 = vector.broadcast %cst_26 : f32 to vector<2x128xf32>
    %48 = arith.subf %47, %46 : vector<2x128xf32>
    %c0_27 = arith.constant 0 : index
    %c0_28 = arith.constant 0 : index
    %c0_29 = arith.constant 0 : index
    %c0_30 = arith.constant 0 : index
    %49 = vector.load %arg5[%c0_27, %c0_28, %c0_29, %c0_30] : memref<1x1x2x128xf32, #tpu.memory_space<vmem>>, vector<1x1x2x128xf32>
    %50 = vector.shape_cast %49 : vector<1x1x2x128xf32> to vector<2x128xf32>
    %51 = arith.addf %50, %48 : vector<2x128xf32>
    %c0_31 = arith.constant 0 : index
    %c0_32 = arith.constant 0 : index
    %c0_33 = arith.constant 0 : index
    %c0_34 = arith.constant 0 : index
    %52 = vector.load %arg5[%c0_31, %c0_32, %c0_33, %c0_34] : memref<1x1x2x128xf32, #tpu.memory_space<vmem>>, vector<1x1x2x128xf32>
    %53 = vector.shape_cast %52 : vector<1x1x2x128xf32> to vector<2x128xf32>
    %54 = vector.shape_cast %51 : vector<2x128xf32> to vector<1x1x2x128xf32>
    tpu.vector_store %arg5[%c0_31, %c0_32, %c0_33, %c0_34], %54 {strides = array<i32>} : memref<1x1x2x128xf32, #tpu.memory_space<vmem>>, vector<1x1x2x128xf32>,
    return
  }
  func.func @transform_0(%arg0: i32, %arg1: i32, %arg2: i32) -> (i32, i32, i32, i32) {
    %c1_i32 = arith.constant 1 : i32
    %0 = arith.muli %arg1, %c1_i32 : i32
    %1 = arith.addi %0, %arg2 : i32
    %c0_i32 = arith.constant 0 : i32
    %2 = arith.minsi %1, %c0_i32 : i32
    %c0_i32_0 = arith.constant 0 : i32
    %c0_i32_1 = arith.constant 0 : i32
    %c0_i32_2 = arith.constant 0 : i32
    return %arg0, %c0_i32_0, %2, %c0_i32_1 : i32, i32, i32, i32
  }
  func.func @transform_1(%arg0: i32, %arg1: i32, %arg2: i32) -> (i32, i32, i32) {
    %c1_i32 = arith.constant 1 : i32
    %0 = arith.muli %arg1, %c1_i32 : i32
    %1 = arith.addi %0, %arg2 : i32
    %c0_i32 = arith.constant 0 : i32
    %2 = arith.minsi %1, %c0_i32 : i32
    %c0_i32_0 = arith.constant 0 : i32
    %c0_i32_1 = arith.constant 0 : i32
    return %arg0, %2, %c0_i32_0 : i32, i32, i32
  }
  func.func @transform_2(%arg0: i32, %arg1: i32, %arg2: i32) -> (i32, i32, i32, i32) {
    %c0_i32 = arith.constant 0 : i32
    %c0_i32_0 = arith.constant 0 : i32
    %c0_i32_1 = arith.constant 0 : i32
    return %arg0, %arg1, %c0_i32, %c0_i32_0 : i32, i32, i32, i32
  }
}

</mosaic_0001>

<llo_original>
// kernel: tpu_custom_call.1
$region0: #{tpu_custom_call.1}
  #allocation0 [shape = 'u32[]', space=smem, size = 0x4, offset = 0x4, fixed_abs, tag = 'smem constant byte address 0x4 - core index']
  #allocation1 [shape = 'u32[144,128]{1,0:T(1,128)}', space=vmem, size = 0x12000, scoped, tag = 'internal scratch']
  %s0 = inlined_call_operand.hbm [shape: f32[2,4,2,128], index: 0, kind: input, shape index: {}]
  %s1 = inlined_call_operand.hbm [shape: s32[2,2,128], index: 1, kind: input, shape index: {}]
  %s2 = inlined_call_operand.hbm [shape: f32[2,1,2,128], index: 2, kind: output, shape index: {}]
  %s3 = sld [smem:[#allocation0]]
  $region53: #{tpu_custom_call.1} parent=0
    _
  %s5 = ssub.s32 1, %s3
  %s6 = scalar_select 0, %s5, %s3
  $region1: #{tpu_custom_call.1} parent=0
    #allocation2 [shape = 'u8[8192]{0}', space=vmem, size = 0x2000, scoped, tag = 'input window, operand 0']
    #allocation3 [shape = 's32[2]{0}', space=sflag, size = 0x8, scoped, tag = 'scoped memory for tpu_custom_call.1']
    #allocation4 [shape = 's32[2]{0}', space=sflag, size = 0x8, scoped, tag = 'scoped memory for tpu_custom_call.1']
    #allocation5 [shape = 'u8[2048]{0}', space=vmem, size = 0x800, scoped, tag = 'input window, operand 1']
    #allocation6 [shape = 's32[2]{0}', space=sflag, size = 0x8, scoped, tag = 'scoped memory for tpu_custom_call.1']
    #allocation7 [shape = 'u8[2048]{0}', space=vmem, size = 0x800, scoped, tag = 'output window, operand 0']
    %7 = vsyncpa [#allocation3], 0
    %s8 = scalar_lea.sflag [#allocation3], 1
    %9 = vsyncpa %s8, 0
    %10 = vsyncpa [#allocation6], 0
    %s11 = scalar_lea.sflag [#allocation6], 1
    %12 = vsyncpa %s11, 0
    %13 = vsyncpa [#allocation4], 0
    %s14 = scalar_lea.sflag [#allocation4], 1
    %15 = vsyncpa %s14, 0
    loop: start=0, step=1, limit=4
    $region2: #{tpu_custom_call.1} parent=1 // loop_pre_header
      _
    $region3: #{tpu_custom_call.1} parent=1 // loop_header
      %s17 = sphi 0, %s21
      %p18 = scmp.ge.s32.totalorder %s17, 4
      %s24 = sphi 0, %s43
      %s25 = sphi 0, %s39
      %s26 = sphi 0, %s35
      %s27 = sphi 0, %s24
      %s28 = sphi 0, %s25
      %s29 = sphi 0, %s26
      %s30 = sphi 0, %s27
      %s31 = sphi 0, %s28
      %s32 = sphi 0, %s29
      %s54 = sphi 0, %s56
      %s57 = sphi 0, %s54
      %s58 = sphi 0, %s57
      %s74 = sphi 0, %s58
      %s88 = sphi 0, %s90
      %s91 = sphi 0, %s88
      %s92 = sphi 0, %s91
      %s108 = sphi 0, %s92
      %s116 = sphi 0, %s118
      %s119 = sphi 0, %s116
      %s120 = sphi 0, %s119
      %s136 = sphi 0, %s120
    $region4: #{tpu_custom_call.1} parent=1 // loop_header_branch
      %20 = sbr.rel (%p18) target = $region8
    $region5: #{tpu_custom_call.1} parent=1 // loop_body
      %s22 = ssub.s32 %s17, 1
      %s23 = ssub.s32 %s17, 2
      %s33 = sadd.s32 1, %s26
      %p34 = scmp.ge.s32.totalorder %s33, 1
      %s35 = scalar_select %p34, 0, %s33
      %s36 = sadd.s32 1, %s25
      %s37 = scalar_select %p34, %s36, %s25
      %p38 = scmp.ge.s32.totalorder %s37, 1
      %s39 = scalar_select %p38, 0, %s37
      %s40 = sadd.s32 1, %s24
      %s41 = scalar_select %p38, %s40, %s24
      %p42 = scmp.ge.s32.totalorder %s41, 2
      %s43 = scalar_select %p42, 0, %s41
      %s44 = sadd.s32 %s25, %s26
      %p45 = scmp.lt.s32.totalorder %s44, 0
      %s46 = scalar_select %p45, %s44, 0
      %s47 = sadd.s32 %s39, %s35
      %p48 = scmp.lt.s32.totalorder %s47, 0
      %s49 = scalar_select %p48, %s47, 0
      %s50 = ssub.s32 %s24, %s43
      %s51 = ssub.s32 %s46, %s49
      %s52 = sor.u32 %s50, %s51
      %p53 = scmp.eq.s32.totalorder %s52, 0
      %s55 = sadd.s32 %s54, 1
      %s56 = scalar_select %p53, %s54, %s55
      %p59 = pneg %p53
      %p60 = scmp.eq.s32.totalorder %s17, 1
      %p61 = por %p59, %p60
      %p62 = scmp.ne.s32.totalorder %s54, %s57
      %p63 = scmp.eq.s32.totalorder %s17, 0
      %p64 = por %p62, %p63
      %p65 = scmp.ne.s32.totalorder %s54, %s57
      %p66 = scmp.eq.s32.totalorder %s22, 1
      %p67 = por %p65, %p66
      %p68 = scmp.ne.s32.totalorder %s57, %s58
      %p69 = scmp.eq.s32.totalorder %s22, 0
      %p70 = por %p68, %p69
      %p71 = scmp.ne.s32.totalorder %s57, %s58
      %p72 = scmp.eq.s32.totalorder %s23, 1
      %p73 = por %p71, %p72
      %p75 = scmp.ne.s32.totalorder %s58, %s74
      %p76 = scmp.eq.s32.totalorder %s23, 0
      %p77 = por %p75, %p76
      %s78 = sadd.s32 %s25, %s26
      %p79 = scmp.lt.s32.totalorder %s78, 0
      %s80 = scalar_select %p79, %s78, 0
      %s81 = sadd.s32 %s39, %s35
      %p82 = scmp.lt.s32.totalorder %s81, 0
      %s83 = scalar_select %p82, %s81, 0
      %s84 = ssub.s32 %s24, %s43
      %s85 = ssub.s32 %s80, %s83
      %s86 = sor.u32 %s84, %s85
      %p87 = scmp.eq.s32.totalorder %s86, 0
      %s89 = sadd.s32 %s88, 1
      %s90 = scalar_select %p87, %s88, %s89
      %p93 = pneg %p87
      %p94 = scmp.eq.s32.totalorder %s17, 1
      %p95 = por %p93, %p94
      %p96 = scmp.ne.s32.totalorder %s88, %s91
      %p97 = scmp.eq.s32.totalorder %s17, 0
      %p98 = por %p96, %p97
      %p99 = scmp.ne.s32.totalorder %s88, %s91
      %p100 = scmp.eq.s32.totalorder %s22, 1
      %p101 = por %p99, %p100
      %p102 = scmp.ne.s32.totalorder %s91, %s92
      %p103 = scmp.eq.s32.totalorder %s22, 0
      %p104 = por %p102, %p103
      %p105 = scmp.ne.s32.totalorder %s91, %s92
      %p106 = scmp.eq.s32.totalorder %s23, 1
      %p107 = por %p105, %p106
      %p109 = scmp.ne.s32.totalorder %s92, %s108
      %p110 = scmp.eq.s32.totalorder %s23, 0
      %p111 = por %p109, %p110
      %s112 = ssub.s32 %s24, %s43
      %s113 = ssub.s32 %s25, %s39
      %s114 = sor.u32 %s112, %s113
      %p115 = scmp.eq.s32.totalorder %s114, 0
      %s117 = sadd.s32 %s116, 1
      %s118 = scalar_select %p115, %s116, %s117
      %p121 = pneg %p115
      %p122 = scmp.eq.s32.totalorder %s17, 1
      %p123 = por %p121, %p122
      %p124 = scmp.ne.s32.totalorder %s116, %s119
      %p125 = scmp.eq.s32.totalorder %s17, 0
      %p126 = por %p124, %p125
      %p127 = scmp.ne.s32.totalorder %s116, %s119
      %p128 = scmp.eq.s32.totalorder %s22, 1
      %p129 = por %p127, %p128
      %p130 = scmp.ne.s32.totalorder %s119, %s120
      %p131 = scmp.eq.s32.totalorder %s22, 0
      %p132 = por %p130, %p131
      %p133 = scmp.ne.s32.totalorder %s119, %s120
      %p134 = scmp.eq.s32.totalorder %s23, 1
      %p135 = por %p133, %p134
      %p137 = scmp.ne.s32.totalorder %s120, %s136
      %p138 = scmp.eq.s32.totalorder %s23, 0
      %p139 = por %p137, %p138
      %p140 = scmp.le.s32.totalorder 1, %s17
      %p141 = scmp.lt.s32.totalorder %s17, 3
      %p142 = pnand %p140, %p141
      %p143 = pneg %p142
      // Predicated region
      $region9: #{tpu_custom_call.1} parent=5 // pred_check
        _
      $region10: #{tpu_custom_call.1} parent=5 // pred_check_branch
        %145 = sbr.rel (%p142) target = $region12
      $region11: #{tpu_custom_call.1} parent=5 // pred_region
        %s146 = ssub.s32 %s17, 1
      $region12: #{tpu_custom_call.1} parent=5 // pred_fallthru
        _
      %p147 = scmp.lt.s32.totalorder %s17, 2
      // Predicated region
      $region13: #{tpu_custom_call.1} parent=5 // pred_check
        %p148 = pneg %p147
      $region14: #{tpu_custom_call.1} parent=5 // pred_check_branch
        %150 = sbr.rel (%p148) target = $region16
      $region15: #{tpu_custom_call.1} parent=5 // pred_region
        // Predicated region
        $region17: #{tpu_custom_call.1} parent=15 // pred_check
          %p151 = pneg %p64
        $region18: #{tpu_custom_call.1} parent=15 // pred_check_branch
          %153 = sbr.rel (%p151) target = $region20
        $region19: #{tpu_custom_call.1} parent=15 // pred_region
          %s154 = sand.u32 %s54, 1
          %s155 = scalar_lea.sflag [#allocation3], %s154
          %s156 = sand.u32 %s54, 1
          %s157 = smul.addr %s156, 8
          %s158 = scalar_lea.vmem [#allocation2], %s157
          %s159 = sadd.s32 %s25, %s26
          %p160 = scmp.lt.s32.totalorder %s159, 0
          %s161 = scalar_select %p160, %s159, 0
          %s163 = ssub.s32 128, 128
          %164 = vsyncadd %s155, %s163
          %s165 = smul.addr %s24, 4
          %s166 = sadd.s32 %s161, %s165
          %s167 = smul.addr %s166, 32
          %s168 = scalar_lea.hbm %s0, %s167
          %s169 = sshll.u32 %s158, 4
          %s170 = int_to_ptr.vmem [resolvable:$true] %s169
          %175 = dma.hbm_to_vmem [thread:$0]  %s168, 128, %s170, %s155, 32, 32, 2
        $region20: #{tpu_custom_call.1} parent=15 // pred_fallthru
          _
        // Predicated region
        $region21: #{tpu_custom_call.1} parent=15 // pred_check
          %p176 = pneg %p98
        $region22: #{tpu_custom_call.1} parent=15 // pred_check_branch
          %178 = sbr.rel (%p176) target = $region24
        $region23: #{tpu_custom_call.1} parent=15 // pred_region
          %s179 = sand.u32 %s88, 1
          %s180 = scalar_lea.sflag [#allocation6], %s179
          %s181 = sand.u32 %s88, 1
          %s182 = smul.addr %s181, 2
          %s183 = scalar_lea.vmem [#allocation5], %s182
          %s184 = sadd.s32 %s25, %s26
          %p185 = scmp.lt.s32.totalorder %s184, 0
          %s186 = scalar_select %p185, %s184, 0
          %s188 = ssub.s32 32, 32
          %189 = vsyncadd %s180, %s188
          %s190 = sadd.s32 %s186, %s24
          %s191 = smul.addr %s190, 32
          %s192 = scalar_lea.hbm %s1, %s191
          %s194 = sshll.u32 %s183, 4
          %s195 = int_to_ptr.vmem [resolvable:$true] %s194
          %197 = dma.hbm_to_vmem [thread:$0]  %s192, 32, %s195, %s180
        $region24: #{tpu_custom_call.1} parent=15 // pred_fallthru
          _
      $region16: #{tpu_custom_call.1} parent=5 // pred_fallthru
        _
      %p198 = scmp.le.s32.totalorder 1, %s17
      %p199 = scmp.lt.s32.totalorder %s17, 3
      %p200 = pnand %p198, %p199
      %p201 = pneg %p200
      // Predicated region
      $region25: #{tpu_custom_call.1} parent=5 // pred_check
        _
      $region26: #{tpu_custom_call.1} parent=5 // pred_check_branch
        %203 = sbr.rel (%p200) target = $region28
      $region27: #{tpu_custom_call.1} parent=5 // pred_region
        %s204 = ssub.s32 %s17, 1
        %s205 = sand.u32 %s57, 1
        %s206 = scalar_lea.sflag [#allocation3], %s205
        %s207 = sand.u32 %s57, 1
        %s208 = smul.addr %s207, 8
        %s209 = scalar_lea.vmem [#allocation2], %s208
        // Predicated region
        $region29: #{tpu_custom_call.1} parent=27 // pred_check
          %p210 = pneg %p70
        $region30: #{tpu_custom_call.1} parent=27 // pred_check_branch
          %212 = sbr.rel (%p210) target = $region32
        $region31: #{tpu_custom_call.1} parent=27 // pred_region
          %213 = dma.done %s206, 128
        $region32: #{tpu_custom_call.1} parent=27 // pred_fallthru
          _
        %s214 = sand.u32 %s91, 1
        %s215 = scalar_lea.sflag [#allocation6], %s214
        %s216 = sand.u32 %s91, 1
        %s217 = smul.addr %s216, 2
        %s218 = scalar_lea.vmem [#allocation5], %s217
        // Predicated region
        $region33: #{tpu_custom_call.1} parent=27 // pred_check
          %p219 = pneg %p104
        $region34: #{tpu_custom_call.1} parent=27 // pred_check_branch
          %221 = sbr.rel (%p219) target = $region36
        $region35: #{tpu_custom_call.1} parent=27 // pred_region
          %222 = dma.done %s215, 32
        $region36: #{tpu_custom_call.1} parent=27 // pred_fallthru
          _
        %s223 = sand.u32 %s57, 1
        %s224 = scalar_lea.sflag [#allocation3], %s223
        %s225 = sand.u32 %s57, 1
        %s226 = smul.addr %s225, 8
        %s227 = scalar_lea.vmem [#allocation2], %s226
        %p228 = pneg %p70
        %p229 = pneg %p67
        %s230 = sand.u32 %s91, 1
        %s231 = scalar_lea.sflag [#allocation6], %s230
        %s232 = sand.u32 %s91, 1
        %s233 = smul.addr %s232, 2
        %s234 = scalar_lea.vmem [#allocation5], %s233
        %p235 = pneg %p104
        %p236 = pneg %p101
        %p237 = pneg %p132
        %p238 = pneg %p129
        %s239 = sand.u32 %s119, 1
        %s240 = scalar_lea.sflag [#allocation4], %s239
        %s241 = sand.u32 %s119, 1
        %s242 = smul.addr %s241, 2
        %s243 = scalar_lea.vmem [#allocation7], %s242
        %s244 = sadd.s32 %s28, %s29
        %p245 = scmp.lt.s32.totalorder %s244, 0
        %s246 = scalar_select %p245, %s244, 0
        %s247 = sadd.s32 %s28, %s29
        %p248 = scmp.lt.s32.totalorder %s247, 0
        %s249 = scalar_select %p248, %s247, 0
        %p250 = scmp.eq.s32.totalorder %s29, 0
        // Predicated region
        $region37: #{tpu_custom_call.1} parent=27 // pred_check
          %p251 = pneg %p250
        $region38: #{tpu_custom_call.1} parent=27 // pred_check_branch
          %253 = sbr.rel (%p251) target = $region40
        $region39: #{tpu_custom_call.1} parent=27 // pred_region
          %254 = vst [vmem:[%s243] sm:$0x3] 0.0
        $region40: #{tpu_custom_call.1} parent=27 // pred_fallthru
          _
        %v255 = vld [vmem:[%s218] sm:$0x3]
        %vm256 = vcmp.eq.s32.totalorder %v255, 0
        %v257 = vsel %vm256, 0.99999, 3.3333333e-06
        %v258 = vld [vmem:[%s209] sm:$0x3]
        %v259 = vmul.f32 %v257, %v258
        %v260 = vadd.f32 %v259, 1e-05
        %vm261 = vcmp.eq.s32.totalorder %v255, 1
        %v262 = vsel %vm261, 0.99999, 3.3333333e-06
        %s263 = scalar_lea.vmem %s209, 2 [#allocation2]
        %v264 = vld [vmem:[%s263] sm:$0x3]
        %v265 = vmul.f32 %v262, %v264
        %v266 = vadd.f32 %v260, %v265
        %vm267 = vcmp.eq.s32.totalorder %v255, 2
        %v268 = vsel %vm267, 0.99999, 3.3333333e-06
        %s269 = scalar_lea.vmem %s209, 4 [#allocation2]
        %v270 = vld [vmem:[%s269] sm:$0x3]
        %v271 = vmul.f32 %v268, %v270
        %v272 = vadd.f32 %v266, %v271
        %vm273 = vcmp.eq.s32.totalorder %v255, 3
        %v274 = vsel %vm273, 0.99999, 3.3333333e-06
        %s275 = scalar_lea.vmem %s209, 6 [#allocation2]
        %v276 = vld [vmem:[%s275] sm:$0x3]
        %v277 = vmul.f32 %v274, %v276
        %v278 = vadd.f32 %v272, %v277
        %v279 = vlog2.pop %v278
        %v280 = vmul.f32 %v279, 0.6931472
        %v281 = vsub.f32 1.0, %v278
        %v282 = vmul.f32 %v281, %v281
        %v283 = vmul.f32 %v282, %v280
        %v284 = vsub.f32 0.0, %v283
        %v285 = vld [vmem:[%s243] sm:$0x3]
        %v286 = vadd.f32 %v285, %v284
        %287 = vst [vmem:[%s243] sm:$0x3] %v286
        %s288 = sand.u32 %s119, 1
        %s289 = scalar_lea.sflag [#allocation4], %s288
        %s290 = sand.u32 %s119, 1
        %s291 = smul.addr %s290, 2
        %s292 = scalar_lea.vmem [#allocation7], %s291
        // Predicated region
        $region41: #{tpu_custom_call.1} parent=27 // pred_check
          %p293 = pneg %p129
        $region42: #{tpu_custom_call.1} parent=27 // pred_check_branch
          %295 = sbr.rel (%p293) target = $region44
        $region43: #{tpu_custom_call.1} parent=27 // pred_region
          %s297 = ssub.s32 32, 32
          %298 = vsyncadd %s289, %s297
          %s299 = sadd.s32 %s28, %s27
          %s300 = smul.addr %s299, 32
          %s301 = scalar_lea.hbm %s2, %s300
          %s303 = sshll.u32 %s292, 4
          %s304 = int_to_ptr.vmem [resolvable:$true] %s303
          %306 = dma.vmem_to_hbm [thread:$0]  %s304, 32, %s301, %s289
        $region44: #{tpu_custom_call.1} parent=27 // pred_fallthru
          _
      $region28: #{tpu_custom_call.1} parent=5 // pred_fallthru
        _
      %p307 = scmp.le.s32.totalorder 2, %s17
      // Predicated region
      $region45: #{tpu_custom_call.1} parent=5 // pred_check
        %p308 = pneg %p307
      $region46: #{tpu_custom_call.1} parent=5 // pred_check_branch
        %310 = sbr.rel (%p308) target = $region48
      $region47: #{tpu_custom_call.1} parent=5 // pred_region
        %s311 = ssub.s32 %s17, 2
        // Predicated region
        $region49: #{tpu_custom_call.1} parent=47 // pred_check
          %p312 = pneg %p135
        $region50: #{tpu_custom_call.1} parent=47 // pred_check_branch
          %314 = sbr.rel (%p312) target = $region52
        $region51: #{tpu_custom_call.1} parent=47 // pred_region
          %s315 = sand.u32 %s120, 1
          %s316 = scalar_lea.sflag [#allocation4], %s315
          %s317 = sand.u32 %s120, 1
          %s318 = smul.addr %s317, 2
          %s319 = scalar_lea.vmem [#allocation7], %s318
          %320 = dma.done %s316, 32
        $region52: #{tpu_custom_call.1} parent=47 // pred_fallthru
          _
      $region48: #{tpu_custom_call.1} parent=5 // pred_fallthru
        _
    $region6: #{tpu_custom_call.1} parent=1 // loop_footer
      %s21 = sadd.s32 1, %s17
    $region7: #{tpu_custom_call.1} parent=1 // loop_footer_branch
      %16 = sbr.rel target = $region3
    $region8: #{tpu_custom_call.1} parent=1 // loop_exit
      _
    %321 = vsyncpa [#allocation3], 1
    %s322 = scalar_lea.sflag [#allocation3], 1
    %323 = vsyncpa %s322, 1
    %324 = vsyncpa [#allocation6], 1
    %s325 = scalar_lea.sflag [#allocation6], 1
    %326 = vsyncpa %s325, 1
    %327 = vsyncpa [#allocation4], 1
    %s328 = scalar_lea.sflag [#allocation4], 1
    %329 = vsyncpa %s328, 1

</llo_original>
